<compile_context>
chip_gen: v7x
topology: tpu7x:2x2x1
jax: 0.10.0
libtpu: 0.0.40
codegen_flags: <defaults>
</compile_context>

<pallas_src>
import jax
import jax.numpy as jnp
from jax.experimental import pallas as pl
from jax.experimental.pallas import tpu as pltpu

_LANES = 128
_SUBLANES = 8


def _round_up(v, m):
    return ((v + m - 1) // m) * m


def _vae_loss_kernel(recon_ref, x_ref, mu_ref, logvar_ref,
                     bce_ref, kld_ref, acc_bce_ref, acc_kld_ref):
    c = pl.program_id(0)   # parallel (per-core) axis
    j = pl.program_id(1)   # streaming / reduction axis

    @pl.when(j == 0)
    def _init():
        acc_bce_ref[...] = jnp.zeros_like(acc_bce_ref)
        acc_kld_ref[...] = jnp.zeros_like(acc_kld_ref)

    # ---- BCE stream: log(1 - |recon - x| / 2) (inputs assumed in [0, 1]) ----
    # Reduce the (tb, 128) contribution over row groups to one (8, 128) vreg
    # before touching the persistent accumulator.
    recon = recon_ref[...].astype(jnp.float32)
    x = x_ref[...].astype(jnp.float32)
    contrib = jnp.log(1.0 - 0.5 * jnp.abs(recon - x))
    tb = contrib.shape[0]
    acc_bce_ref[...] += contrib.reshape(
        tb // _SUBLANES, _SUBLANES, _LANES).sum(axis=0)

    # ---- KLD stream: 1 + logvar - mu^2 - exp(logvar), processed once -------
    @pl.when(jnp.logical_and(c == 0, j == 0))
    def _kld():
        mu = mu_ref[...].astype(jnp.float32)
        lv = logvar_ref[...].astype(jnp.float32)
        k = 1.0 + lv - mu * mu - jnp.exp(lv)
        rk = k.shape[0]
        acc_kld_ref[...] += k.reshape(
            rk // _SUBLANES, _SUBLANES, _LANES).sum(axis=0)

    @pl.when(j == pl.num_programs(1) - 1)
    def _finalize():
        # Raw per-core partial sums; sign/scale folded in the wrapper.
        bce_ref[0, 0] = jnp.sum(acc_bce_ref[...])
        kld_ref[0, 0] = jnp.sum(acc_kld_ref[...])


def _to_lane_slab(a, padded_rows):
    """Row-major flatten -> lane-dense (padded_rows, 128) slab.

    Pure (free) reshape when the element count already equals
    padded_rows * 128; otherwise a single zero-pad copy (zeros contribute
    exactly 0 to both loss terms)."""
    flat = a.reshape(-1)
    pad = padded_rows * _LANES - flat.shape[0]
    if pad:
        flat = jnp.pad(flat, (0, pad))
    return flat.reshape(padded_rows, _LANES)


def vae_loss(recon_x, x, mu, logvar, N=16, tile_rows=4096, n_split=None):
    """Pallas equivalent of Loss_Function_VAE.forward -> (BCE, KLD) scalars.

    recon_x: (B, N*N); x: anything that flattens row-major to the same size
    (e.g. NCHW (B, 1, N, N)); mu/logvar: (B, Z) (assumed small enough to sit
    resident in VMEM).  Inputs may be f32 or bf16; compute/accumulation is f32.
    """
    n_bce = int(recon_x.size)
    assert int(x.size) == n_bce, "x must flatten to the same size as recon_x"
    assert mu.shape == logvar.shape
    n_kld = int(mu.size)

    # Row alignment matches the native (8*packing, 128) tile of the HBM dtype
    # (8 rows for f32, 16 for bf16) so no relayout is needed.
    align_b = _SUBLANES * max(1, 4 // jnp.dtype(recon_x.dtype).itemsize)
    align_k = _SUBLANES * max(1, 4 // jnp.dtype(mu.dtype).itemsize)

    rows_bce = _round_up(pl.cdiv(n_bce, _LANES), align_b)
    rows_kld_p = _round_up(pl.cdiv(n_kld, _LANES), align_k)

    # Grid = (parallel core split, streaming steps).  tb is derived from the
    # step count, so tail padding is at most one aligned row group.
    total_steps = max(1, pl.cdiv(rows_bce, _round_up(tile_rows, align_b)))
    if n_split is None:
        n_split = 2 if total_steps >= 2 else 1   # feeds both TCs on v7x
    steps = pl.cdiv(total_steps, n_split)
    tb = _round_up(pl.cdiv(rows_bce, n_split * steps), align_b)
    rows_bce_p = n_split * steps * tb

    recon_slab = _to_lane_slab(recon_x, rows_bce_p)
    x_slab = _to_lane_slab(x, rows_bce_p)
    mu_slab = _to_lane_slab(mu, rows_kld_p)
    lv_slab = _to_lane_slab(logvar, rows_kld_p)

    itm_bce = jnp.dtype(recon_x.dtype).itemsize
    itm_kld = jnp.dtype(mu.dtype).itemsize
    cost = pl.CostEstimate(
        flops=5 * n_bce + 5 * n_kld,
        transcendentals=n_bce + n_kld,
        bytes_accessed=2 * n_bce * itm_bce + 2 * n_kld * itm_kld + 8 * n_split,
    )

    bce_parts, kld_parts = pl.pallas_call(
        _vae_loss_kernel,
        out_shape=(
            jax.ShapeDtypeStruct((n_split, 1), jnp.float32),
            jax.ShapeDtypeStruct((n_split, 1), jnp.float32),
        ),
        grid=(n_split, steps),
        in_specs=[
            pl.BlockSpec((tb, _LANES), lambda c, j: (c * steps + j, 0)),
            pl.BlockSpec((tb, _LANES), lambda c, j: (c * steps + j, 0)),
            # mu / logvar: full small slab, constant index -> fetched once.
            pl.BlockSpec((rows_kld_p, _LANES), lambda c, j: (0, 0)),
            pl.BlockSpec((rows_kld_p, _LANES), lambda c, j: (0, 0)),
        ],
        out_specs=(
            pl.BlockSpec((1, 1), lambda c, j: (c, 0), memory_space=pltpu.SMEM),
            pl.BlockSpec((1, 1), lambda c, j: (c, 0), memory_space=pltpu.SMEM),
        ),
        scratch_shapes=[
            pltpu.VMEM((_SUBLANES, _LANES), jnp.float32),   # BCE partial (1 vreg)
            pltpu.VMEM((_SUBLANES, _LANES), jnp.float32),   # KLD partial (1 vreg)
        ],
        compiler_params=pltpu.CompilerParams(
            dimension_semantics=("parallel", "arbitrary"),
        ),
        cost_estimate=cost,
    )(recon_slab, x_slab, mu_slab, lv_slab)

    bce = -jnp.sum(bce_parts)
    kld = -0.5 * jnp.sum(kld_parts)
    return bce, kld


if __name__ == "__main__":
    N = 16
    Z = 32

    def reference(recon_x, x, mu, logvar):
        x_flat = x.reshape(-1, N * N)
        bce = jnp.sum(-jnp.log(1.0 - jnp.abs(recon_x - x_flat) / 2.0))
        kld = -0.5 * jnp.sum(1.0 + logvar - mu ** 2 - jnp.exp(logvar))
        return bce, kld

    key = jax.random.PRNGKey(0)

    # Second case uses a tiny tile so the multi-step grid + 2-way core-parallel
    # partial-sum path is exercised.
    for B, tile_rows in ((2, 4096), (64, 16)):
        k1, k2, k3, k4, key = jax.random.split(key, 5)
        x = jax.random.uniform(k1, (B, 1, N, N), dtype=jnp.float32)
        recon_x = jax.random.uniform(k2, (B, N * N), dtype=jnp.float32)
        mu = jax.random.normal(k3, (B, Z), dtype=jnp.float32) * 0.5
        logvar = jax.random.normal(k4, (B, Z), dtype=jnp.float32) * 0.5

        bce, kld = vae_loss(recon_x, x, mu, logvar, N=N, tile_rows=tile_rows)
        jax.block_until_ready((bce, kld))

        bce_ref, kld_ref = reference(recon_x, x, mu, logvar)
        assert jnp.allclose(bce, bce_ref, rtol=1e-5, atol=1e-4), (B, bce, bce_ref)
        assert jnp.allclose(kld, kld_ref, rtol=1e-5, atol=1e-4), (B, kld, kld_ref)

    print("KERNEL_OK")
</pallas_src>

<mosaic_0001>
module attributes {stable_mosaic.version = 11 : i64} {
  func.func @_vae_loss_kernel(%arg0: i32, %arg1: i32, %arg2: memref<8x128xf32, #tpu.memory_space<vmem>>, %arg3: memref<8x128xf32, #tpu.memory_space<vmem>>, %arg4: memref<8x128xf32, #tpu.memory_space<vmem>>, %arg5: memref<8x128xf32, #tpu.memory_space<vmem>>, %arg6: memref<1x1xf32, #tpu.memory_space<smem>>, %arg7: memref<1x1xf32, #tpu.memory_space<smem>>, %arg8: memref<8x128xf32, #tpu.memory_space<vmem>>, %arg9: memref<8x128xf32, #tpu.memory_space<vmem>>) attributes {dimension_semantics = [#tpu.dimension_semantics<parallel>, #tpu.dimension_semantics<arbitrary>], iteration_bounds = array<i64: 1, 1>, scalar_prefetch = 0 : i64, scratch_operands = 2 : i64, tpu.core_type = #tpu.core_type<tc>, window_params = [{transform_indices = @transform_0, window_bounds = array<i64: 8, 128>}, {transform_indices = @transform_1, window_bounds = array<i64: 8, 128>}, {pipeline_mode = #tpu.pipeline_mode<synchronous>, transform_indices = @transform_2, window_bounds = array<i64: 8, 128>}, {pipeline_mode = #tpu.pipeline_mode<synchronous>, transform_indices = @transform_3, window_bounds = array<i64: 8, 128>}, {transform_indices = @transform_4, window_bounds = array<i64: 1, 1>}, {transform_indices = @transform_5, window_bounds = array<i64: 1, 1>}]} {
    %c0_i32 = arith.constant 0 : i32
    %0 = arith.cmpi eq, %arg1, %c0_i32 : i32
    %1 = arith.extui %0 : i1 to i32
    %c0_i32_0 = arith.constant 0 : i32
    %2 = arith.cmpi ne, %1, %c0_i32_0 : i32
    scf.if %2 {
      %cst_15 = arith.constant 0.000000e+00 : f32
      %25 = vector.broadcast %cst_15 : f32 to vector<8x128xf32>
      %c0_16 = arith.constant 0 : index
      %c0_17 = arith.constant 0 : index
      %26 = vector.load %arg8[%c0_16, %c0_17] : memref<8x128xf32, #tpu.memory_space<vmem>>, vector<8x128xf32>
      tpu.vector_store %arg8[%c0_16, %c0_17], %25 {strides = array<i32>} : memref<8x128xf32, #tpu.memory_space<vmem>>, vector<8x128xf32>,
      %cst_18 = arith.constant 0.000000e+00 : f32
      %27 = vector.broadcast %cst_18 : f32 to vector<8x128xf32>
      %c0_19 = arith.constant 0 : index
      %c0_20 = arith.constant 0 : index
      %28 = vector.load %arg9[%c0_19, %c0_20] : memref<8x128xf32, #tpu.memory_space<vmem>>, vector<8x128xf32>
      tpu.vector_store %arg9[%c0_19, %c0_20], %27 {strides = array<i32>} : memref<8x128xf32, #tpu.memory_space<vmem>>, vector<8x128xf32>,
    } else {
    }
    %c0 = arith.constant 0 : index
    %c0_1 = arith.constant 0 : index
    %3 = vector.load %arg2[%c0, %c0_1] : memref<8x128xf32, #tpu.memory_space<vmem>>, vector<8x128xf32>
    %c0_2 = arith.constant 0 : index
    %c0_3 = arith.constant 0 : index
    %4 = vector.load %arg3[%c0_2, %c0_3] : memref<8x128xf32, #tpu.memory_space<vmem>>, vector<8x128xf32>
    %5 = arith.subf %3, %4 : vector<8x128xf32>
    %6 = math.absf %5 : vector<8x128xf32>
    %cst = arith.constant 5.000000e-01 : f32
    %7 = vector.broadcast %cst : f32 to vector<8x128xf32>
    %8 = arith.mulf %7, %6 : vector<8x128xf32>
    %cst_4 = arith.constant 1.000000e+00 : f32
    %9 = vector.broadcast %cst_4 : f32 to vector<8x128xf32>
    %10 = arith.subf %9, %8 : vector<8x128xf32>
    %11 = math.log %10 : vector<8x128xf32>
    %c0_5 = arith.constant 0 : index
    %c0_6 = arith.constant 0 : index
    %12 = vector.load %arg8[%c0_5, %c0_6] : memref<8x128xf32, #tpu.memory_space<vmem>>, vector<8x128xf32>
    %13 = vector.shape_cast %11 : vector<8x128xf32> to vector<1x8x128xf32>
    %cst_7 = arith.constant dense<0.000000e+00> : vector<8x128xf32>
    %14 = vector.multi_reduction <add>, %13, %cst_7 [0] : vector<1x8x128xf32> to vector<8x128xf32>
    %15 = arith.addf %12, %14 : vector<8x128xf32>
    %c0_8 = arith.constant 0 : index
    %c0_9 = arith.constant 0 : index
    %16 = vector.load %arg8[%c0_8, %c0_9] : memref<8x128xf32, #tpu.memory_space<vmem>>, vector<8x128xf32>
    tpu.vector_store %arg8[%c0_8, %c0_9], %15 {strides = array<i32>} : memref<8x128xf32, #tpu.memory_space<vmem>>, vector<8x128xf32>,
    %c0_i32_10 = arith.constant 0 : i32
    %17 = arith.cmpi eq, %arg0, %c0_i32_10 : i32
    %c0_i32_11 = arith.constant 0 : i32
    %18 = arith.cmpi eq, %arg1, %c0_i32_11 : i32
    %19 = arith.andi %17, %18 : i1
    %20 = arith.extui %19 : i1 to i32
    %c0_i32_12 = arith.constant 0 : i32
    %21 = arith.cmpi ne, %20, %c0_i32_12 : i32
    scf.if %21 {
      %c0_15 = arith.constant 0 : index
      %c0_16 = arith.constant 0 : index
      %25 = vector.load %arg4[%c0_15, %c0_16] : memref<8x128xf32, #tpu.memory_space<vmem>>, vector<8x128xf32>
      %c0_17 = arith.constant 0 : index
      %c0_18 = arith.constant 0 : index
      %26 = vector.load %arg5[%c0_17, %c0_18] : memref<8x128xf32, #tpu.memory_space<vmem>>, vector<8x128xf32>
      %cst_19 = arith.constant 1.000000e+00 : f32
      %27 = vector.broadcast %cst_19 : f32 to vector<8x128xf32>
      %28 = arith.addf %27, %26 : vector<8x128xf32>
      %29 = arith.mulf %25, %25 : vector<8x128xf32>
      %30 = arith.subf %28, %29 : vector<8x128xf32>
      %31 = math.exp %26 : vector<8x128xf32>
      %32 = arith.subf %30, %31 : vector<8x128xf32>
      %c0_20 = arith.constant 0 : index
      %c0_21 = arith.constant 0 : index
      %33 = vector.load %arg9[%c0_20, %c0_21] : memref<8x128xf32, #tpu.memory_space<vmem>>, vector<8x128xf32>
      %34 = vector.shape_cast %32 : vector<8x128xf32> to vector<1x8x128xf32>
      %cst_22 = arith.constant dense<0.000000e+00> : vector<8x128xf32>
      %35 = vector.multi_reduction <add>, %34, %cst_22 [0] : vector<1x8x128xf32> to vector<8x128xf32>
      %36 = arith.addf %33, %35 : vector<8x128xf32>
      %c0_23 = arith.constant 0 : index
      %c0_24 = arith.constant 0 : index
      %37 = vector.load %arg9[%c0_23, %c0_24] : memref<8x128xf32, #tpu.memory_space<vmem>>, vector<8x128xf32>
      tpu.vector_store %arg9[%c0_23, %c0_24], %36 {strides = array<i32>} : memref<8x128xf32, #tpu.memory_space<vmem>>, vector<8x128xf32>,
    } else {
    }
    %c0_i32_13 = arith.constant 0 : i32
    %22 = arith.cmpi eq, %arg1, %c0_i32_13 : i32
    %23 = arith.extui %22 : i1 to i32
    %c0_i32_14 = arith.constant 0 : i32
    %24 = arith.cmpi ne, %23, %c0_i32_14 : i32
    scf.if %24 {
      %c0_15 = arith.constant 0 : index
      %c0_16 = arith.constant 0 : index
      %25 = vector.load %arg8[%c0_15, %c0_16] : memref<8x128xf32, #tpu.memory_space<vmem>>, vector<8x128xf32>
      %26 = vector.shape_cast %25 : vector<8x128xf32> to vector<1x8x128xf32>
      %cst_17 = arith.constant dense<0.000000e+00> : vector<1xf32>
      %27 = vector.multi_reduction <add>, %26, %cst_17 [1, 2] : vector<1x8x128xf32> to vector<1xf32>
      %28 = vector.shape_cast %27 : vector<1xf32> to vector<1x1x1xf32>
      %29 = vector.extract %28[0, 0, 0] : f32 from vector<1x1x1xf32>
      %c0_18 = arith.constant 0 : index
      %c0_19 = arith.constant 0 : index
      %30 = memref.load %arg6[%c0_18, %c0_19] : memref<1x1xf32, #tpu.memory_space<smem>>
      memref.store %29, %arg6[%c0_18, %c0_19] : memref<1x1xf32, #tpu.memory_space<smem>>
      %c0_20 = arith.constant 0 : index
      %c0_21 = arith.constant 0 : index
      %31 = vector.load %arg9[%c0_20, %c0_21] : memref<8x128xf32, #tpu.memory_space<vmem>>, vector<8x128xf32>
      %32 = vector.shape_cast %31 : vector<8x128xf32> to vector<1x8x128xf32>
      %cst_22 = arith.constant dense<0.000000e+00> : vector<1xf32>
      %33 = vector.multi_reduction <add>, %32, %cst_22 [1, 2] : vector<1x8x128xf32> to vector<1xf32>
      %34 = vector.shape_cast %33 : vector<1xf32> to vector<1x1x1xf32>
      %35 = vector.extract %34[0, 0, 0] : f32 from vector<1x1x1xf32>
      %c0_23 = arith.constant 0 : index
      %c0_24 = arith.constant 0 : index
      %36 = memref.load %arg7[%c0_23, %c0_24] : memref<1x1xf32, #tpu.memory_space<smem>>
      memref.store %35, %arg7[%c0_23, %c0_24] : memref<1x1xf32, #tpu.memory_space<smem>>
    } else {
    }
    return
  }
  func.func @transform_0(%arg0: i32, %arg1: i32) -> (i32, i32) {
    %c1_i32 = arith.constant 1 : i32
    %0 = arith.muli %arg0, %c1_i32 : i32
    %1 = arith.addi %0, %arg1 : i32
    %c0_i32 = arith.constant 0 : i32
    %c0_i32_0 = arith.constant 0 : i32
    return %1, %c0_i32 : i32, i32
  }
  func.func @transform_1(%arg0: i32, %arg1: i32) -> (i32, i32) {
    %c1_i32 = arith.constant 1 : i32
    %0 = arith.muli %arg0, %c1_i32 : i32
    %1 = arith.addi %0, %arg1 : i32
    %c0_i32 = arith.constant 0 : i32
    %c0_i32_0 = arith.constant 0 : i32
    return %1, %c0_i32 : i32, i32
  }
  func.func @transform_2(%arg0: i32, %arg1: i32) -> (i32, i32) {
    %c0_i32 = arith.constant 0 : i32
    %c0_i32_0 = arith.constant 0 : i32
    %c0_i32_1 = arith.constant 0 : i32
    return %c0_i32, %c0_i32_0 : i32, i32
  }
  func.func @transform_3(%arg0: i32, %arg1: i32) -> (i32, i32) {
    %c0_i32 = arith.constant 0 : i32
    %c0_i32_0 = arith.constant 0 : i32
    %c0_i32_1 = arith.constant 0 : i32
    return %c0_i32, %c0_i32_0 : i32, i32
  }
  func.func @transform_4(%arg0: i32, %arg1: i32) -> (i32, i32) {
    %c0_i32 = arith.constant 0 : i32
    %c0_i32_0 = arith.constant 0 : i32
    return %arg0, %c0_i32 : i32, i32
  }
  func.func @transform_5(%arg0: i32, %arg1: i32) -> (i32, i32) {
    %c0_i32 = arith.constant 0 : i32
    %c0_i32_0 = arith.constant 0 : i32
    return %arg0, %c0_i32 : i32, i32
  }
}

</mosaic_0001>

<llo_original>
// kernel: tpu_custom_call.1
$region0: #{tpu_custom_call.1}
  #allocation0 [shape = 'u32[]', space=smem, size = 0x4, offset = 0x4, fixed_abs, tag = 'smem constant byte address 0x4 - core index']
  #allocation1 [shape = 'u32[144,128]{1,0:T(1,128)}', space=vmem, size = 0x12000, scoped, tag = 'internal scratch']
  #allocation2 [shape = 'f32[8,128]{1,0:T(8,128)}', space=vmem, size = 0x1000, scoped, tag = 'scratch operand']
  #allocation3 [shape = 'f32[8,128]{1,0:T(8,128)}', space=vmem, size = 0x1000, scoped, tag = 'scratch operand']
  %s0 = inlined_call_operand.hbm [shape: f32[8,128], index: 0, kind: input, shape index: {}]
  %s1 = inlined_call_operand.hbm [shape: f32[8,128], index: 1, kind: input, shape index: {}]
  %s2 = inlined_call_operand.hbm [shape: f32[8,128], index: 2, kind: input, shape index: {}]
  %s3 = inlined_call_operand.vmem [shape: f32[8,128], index: 3, kind: input, shape index: {}]
  %s4 = inlined_call_operand.hbm [shape: f32[1,1], index: 4, kind: output, shape index: {0}]
  %s5 = inlined_call_operand.hbm [shape: f32[1,1], index: 5, kind: output, shape index: {1}]
  %6 = xla_tuple %s4, %s5
  %s7 = sld [smem:[#allocation0]]
  $region58: #{tpu_custom_call.1} parent=0
    _
  %s9 = ssub.s32 1, %s7
  %s10 = scalar_select 0, %s9, %s7
  $region1: #{tpu_custom_call.1} parent=0
    #allocation4 [shape = 'u8[4096]{0}', space=vmem, size = 0x1000, scoped, tag = 'input window, operand 0, single buffered']
    #allocation5 [shape = 's32[1]{0}', space=sflag, size = 0x4, scoped, tag = 'scoped memory for tpu_custom_call.1']
    #allocation6 [shape = 's32[1]{0}', space=sflag, size = 0x4, scoped, tag = 'scoped memory for tpu_custom_call.1']
    #allocation7 [shape = 'u8[4096]{0}', space=vmem, size = 0x1000, scoped, tag = 'input window, operand 1, single buffered']
    #allocation8 [shape = 's32[1]{0}', space=sflag, size = 0x4, scoped, tag = 'scoped memory for tpu_custom_call.1']
    #allocation9 [shape = 'u8[4096]{0}', space=vmem, size = 0x1000, scoped, tag = 'input window, operand 2, single buffered']
    #allocation10 [shape = 'u8[512]{0}', space=smem, size = 0x200, scoped, tag = 'output window, operand 0, single buffered']
    #allocation11 [shape = 'u8[512]{0}', space=smem, size = 0x200, scoped, tag = 'output window, operand 1, single buffered']
    #allocation12 [shape = 's32[1]{0}', space=sflag, size = 0x4, scoped, tag = 'scoped memory for tpu_custom_call.1']
    %11 = vsyncpa [#allocation5], 0
    %12 = vsyncpa [#allocation8], 0
    %13 = vsyncpa [#allocation6], 0
    %14 = vsyncpa [#allocation12], 0
    // Predicated region
    $region2: #{tpu_custom_call.1} parent=1 // pred_check
      _
    $region3: #{tpu_custom_call.1} parent=1 // pred_check_branch
      %16 = sbr.rel (0) target = $region5
    $region4: #{tpu_custom_call.1} parent=1 // pred_region
      %s17 = sadd.s32 0, 0
      %s19 = ssub.s32 128, 128
      %20 = vsyncadd [#allocation5], %s19
      %s21 = smul.addr %s17, 128
      %s22 = scalar_lea.hbm %s0, %s21
      %s24 = sshll.u32 [#allocation4], 4
      %s25 = int_to_ptr.vmem [resolvable:$true] %s24
      %27 = dma.hbm_to_vmem [thread:$0]  %s22, 128, %s25, [#allocation5]
    $region5: #{tpu_custom_call.1} parent=1 // pred_fallthru
      _
    // Predicated region
    $region6: #{tpu_custom_call.1} parent=1 // pred_check
      _
    $region7: #{tpu_custom_call.1} parent=1 // pred_check_branch
      %29 = sbr.rel (0) target = $region9
    $region8: #{tpu_custom_call.1} parent=1 // pred_region
      %s30 = sadd.s32 0, 0
      %s32 = ssub.s32 128, 128
      %33 = vsyncadd [#allocation8], %s32
      %s34 = smul.addr %s30, 128
      %s35 = scalar_lea.hbm %s1, %s34
      %s37 = sshll.u32 [#allocation7], 4
      %s38 = int_to_ptr.vmem [resolvable:$true] %s37
      %40 = dma.hbm_to_vmem [thread:$0]  %s35, 128, %s38, [#allocation8]
    $region9: #{tpu_custom_call.1} parent=1 // pred_fallthru
      _
    // Predicated region
    $region10: #{tpu_custom_call.1} parent=1 // pred_check
      _
    $region11: #{tpu_custom_call.1} parent=1 // pred_check_branch
      %42 = sbr.rel (0) target = $region13
    $region12: #{tpu_custom_call.1} parent=1 // pred_region
      %s44 = ssub.s32 128, 128
      %45 = vsyncadd [#allocation8], %s44
      %s47 = sshll.u32 [#allocation9], 4
      %s48 = int_to_ptr.vmem [resolvable:$true] %s47
      %50 = dma.hbm_to_vmem [thread:$0]  %s2, 128, %s48, [#allocation8]
    $region13: #{tpu_custom_call.1} parent=1 // pred_fallthru
      _
    // Predicated region
    $region14: #{tpu_custom_call.1} parent=1 // pred_check
      _
    $region15: #{tpu_custom_call.1} parent=1 // pred_check_branch
      %52 = sbr.rel (0) target = $region17
    $region16: #{tpu_custom_call.1} parent=1 // pred_region
      _
    $region17: #{tpu_custom_call.1} parent=1 // pred_fallthru
      _
    // Predicated region
    $region18: #{tpu_custom_call.1} parent=1 // pred_check
      _
    $region19: #{tpu_custom_call.1} parent=1 // pred_check_branch
      %54 = sbr.rel (0) target = $region21
    $region20: #{tpu_custom_call.1} parent=1 // pred_region
      %55 = dma.done [#allocation5], 128
    $region21: #{tpu_custom_call.1} parent=1 // pred_fallthru
      _
    // Predicated region
    $region22: #{tpu_custom_call.1} parent=1 // pred_check
      _
    $region23: #{tpu_custom_call.1} parent=1 // pred_check_branch
      %57 = sbr.rel (0) target = $region25
    $region24: #{tpu_custom_call.1} parent=1 // pred_region
      %58 = dma.done [#allocation8], 128
    $region25: #{tpu_custom_call.1} parent=1 // pred_fallthru
      _
    // Predicated region
    $region26: #{tpu_custom_call.1} parent=1 // pred_check
      _
    $region27: #{tpu_custom_call.1} parent=1 // pred_check_branch
      %60 = sbr.rel (0) target = $region29
    $region28: #{tpu_custom_call.1} parent=1 // pred_region
      %61 = dma.done [#allocation8], 128
    $region29: #{tpu_custom_call.1} parent=1 // pred_fallthru
      _
    %s62 = sadd.s32 0, 0
    %s63 = sadd.s32 0, 0
    %p64 = scmp.eq.s32.totalorder 0, 0
    // Predicated region
    $region30: #{tpu_custom_call.1} parent=1 // pred_check
      %p65 = pneg %p64
    $region31: #{tpu_custom_call.1} parent=1 // pred_check_branch
      %67 = sbr.rel (%p65) target = $region33
    $region32: #{tpu_custom_call.1} parent=1 // pred_region
      %68 = vst [vmem:[#allocation2] sm:$0xff] 0.0
      %69 = vst [vmem:[#allocation3] sm:$0xff] 0.0
    $region33: #{tpu_custom_call.1} parent=1 // pred_fallthru
      _
    %v70 = vld [vmem:[#allocation4] sm:$0xff]
    %v71 = vld [vmem:[#allocation7] sm:$0xff]
    %v72 = vsub.f32 %v70, %v71
    %v73 = vand.u32 2147483647, %v72
    %v74 = vmul.f32 %v73, 0.5
    %v75 = vsub.f32 1.0, %v74
    %v76 = vlog2.pop %v75
    %v77 = vmul.f32 %v76, 0.6931472
    %v78 = vld [vmem:[#allocation2] sm:$0xff]
    %v79 = vadd.f32 %v77, 0.0
    %v80 = vadd.f32 %v78, %v79
    %81 = vst [vmem:[#allocation2] sm:$0xff] %v80
    %p82 = scmp.eq.s32.totalorder 0, 0
    %p83 = pnand %p82, %p64
    %p84 = pneg %p83
    // Predicated region
    $region34: #{tpu_custom_call.1} parent=1 // pred_check
      _
    $region35: #{tpu_custom_call.1} parent=1 // pred_check_branch
      %86 = sbr.rel (%p83) target = $region37
    $region36: #{tpu_custom_call.1} parent=1 // pred_region
      %v87 = vld [vmem:[#allocation9] sm:$0xff]
      %v88 = vld [vmem:[%s3] sm:$0xff]
      %v89 = vadd.f32 %v88, 1.0
      %v90 = vmul.f32 %v87, %v87
      %v91 = vsub.f32 %v89, %v90
      %v92 = vmul.f32 %v88, 1.442695
      %v93 = vpow.pop %v92
      %v94 = vsub.f32 %v91, %v93
      %v95 = vld [vmem:[#allocation3] sm:$0xff]
      %v96 = vadd.f32 %v94, 0.0
      %v97 = vadd.f32 %v95, %v96
      %98 = vst [vmem:[#allocation3] sm:$0xff] %v97
    $region37: #{tpu_custom_call.1} parent=1 // pred_fallthru
      _
    // Predicated region
    $region38: #{tpu_custom_call.1} parent=1 // pred_check
      %p99 = pneg %p64
    $region39: #{tpu_custom_call.1} parent=1 // pred_check_branch
      %101 = sbr.rel (%p99) target = $region41
    $region40: #{tpu_custom_call.1} parent=1 // pred_region
      %v102 = vld [vmem:[#allocation2] sm:$0xff]
      %103 = vadd.xlane.f32.xlu0 %v102
      %v104 = vpop.xlane.xlu0 %103
      %v105 = vrot.slane %v104, 4
      %v106 = vadd.f32 %v104, %v105
      %v107 = vrot.slane %v106, 2
      %v108 = vadd.f32 %v106, %v107
      %v109 = vrot.slane %v108, 1
      %v110 = vadd.f32 %v108, %v109
      %s111 = vtos %v110
      %s112 = scalar_lea.smem [#allocation10], 0
      %113 = sst [smem:[%s112]] %s111
      %v114 = vld [vmem:[#allocation3] sm:$0xff]
      %115 = vadd.xlane.f32.xlu0 %v114
      %v116 = vpop.xlane.xlu0 %115
      %v117 = vrot.slane %v116, 4
      %v118 = vadd.f32 %v116, %v117
      %v119 = vrot.slane %v118, 2
      %v120 = vadd.f32 %v118, %v119
      %v121 = vrot.slane %v120, 1
      %v122 = vadd.f32 %v120, %v121
      %s123 = vtos %v122
      %s124 = scalar_lea.smem [#allocation11], 0
      %125 = sst [smem:[%s124]] %s123
    $region41: #{tpu_custom_call.1} parent=1 // pred_fallthru
      _
    // Predicated region
    $region42: #{tpu_custom_call.1} parent=1 // pred_check
      _
    $region43: #{tpu_custom_call.1} parent=1 // pred_check_branch
      %127 = sbr.rel (0) target = $region45
    $region44: #{tpu_custom_call.1} parent=1 // pred_region
      %s129 = ssub.s32 16, 16
      %130 = vsyncadd [#allocation6], %s129
      %133 = dma.smem_to_hbm [#allocation10], 16, %s4, [#allocation6]
    $region45: #{tpu_custom_call.1} parent=1 // pred_fallthru
      _
    // Predicated region
    $region46: #{tpu_custom_call.1} parent=1 // pred_check
      _
    $region47: #{tpu_custom_call.1} parent=1 // pred_check_branch
      %135 = sbr.rel (0) target = $region49
    $region48: #{tpu_custom_call.1} parent=1 // pred_region
      %s137 = ssub.s32 16, 16
      %138 = vsyncadd [#allocation12], %s137
      %141 = dma.smem_to_hbm [#allocation11], 16, %s5, [#allocation12]
    $region49: #{tpu_custom_call.1} parent=1 // pred_fallthru
      _
    // Predicated region
    $region50: #{tpu_custom_call.1} parent=1 // pred_check
      _
    $region51: #{tpu_custom_call.1} parent=1 // pred_check_branch
      %143 = sbr.rel (0) target = $region53
    $region52: #{tpu_custom_call.1} parent=1 // pred_region
      %144 = dma.done [#allocation6], 16
    $region53: #{tpu_custom_call.1} parent=1 // pred_fallthru
      _
    // Predicated region
    $region54: #{tpu_custom_call.1} parent=1 // pred_check
      _
    $region55: #{tpu_custom_call.1} parent=1 // pred_check_branch
      %146 = sbr.rel (0) target = $region57
    $region56: #{tpu_custom_call.1} parent=1 // pred_region
      %147 = dma.done [#allocation12], 16
    $region57: #{tpu_custom_call.1} parent=1 // pred_fallthru
      _
    %148 = sfence
    %149 = vsyncpa [#allocation5], 1
    %150 = vsyncpa [#allocation8], 1
    %151 = vsyncpa [#allocation6], 1
    %152 = vsyncpa [#allocation12], 1

</llo_original>
